<compile_context>
chip_gen: v7x
topology: tpu7x:2x2x1
jax: 0.10.0
libtpu: 0.0.40
codegen_flags: <defaults>
</compile_context>

<pallas_src>
import functools

import jax
import jax.numpy as jnp
from jax.experimental import pallas as pl
from jax.experimental.pallas import tpu as pltpu


def _round_up(x: int, m: int) -> int:
    return ((x + m - 1) // m) * m


@functools.lru_cache(maxsize=None)
def _vmem_budget_bytes() -> int:
    """Per-core VMEM capacity minus headroom for Mosaic scratch / MXU staging."""
    try:
        cap = int(pltpu.get_tpu_info().vmem_capacity_bytes)
    except Exception:
        cap = 64 * 1024 * 1024  # conservative (v7x-sized) fallback
    return max(cap - 16 * 1024 * 1024, 32 * 1024 * 1024)


def ffn_kernel(x_ref, w1_ref, b1_ref, w2_ref, b2_ref, o_ref, acc_ref):
    # x_ref : (tm, d_model_p)   compute dtype (bf16)
    # w1_ref: (d_model_p, tf)   compute dtype
    # b1_ref: (1, tf)           f32
    # w2_ref: (tf, d_model_p)   compute dtype
    # b2_ref: (1, d_model_p)    f32
    # o_ref : (tm, d_model_p)   output dtype
    # acc_ref: (tm, d_model_p)  f32 scratch, lives across the d_ff reduction axis
    f = pl.program_id(1)

    @pl.when(f == 0)
    def _():
        acc_ref[...] = jnp.broadcast_to(
            b2_ref[...].astype(jnp.float32), acc_ref.shape)

    # First matmul + bias + ReLU for this d_ff slab (f32 accumulation / VPU math).
    h = jnp.dot(x_ref[...], w1_ref[...], preferred_element_type=jnp.float32)
    h = jnp.maximum(h + b1_ref[...], 0.0)

    # Second matmul: partial contribution of this d_ff slab, accumulated in f32.
    acc_ref[...] += jnp.dot(h.astype(w2_ref.dtype), w2_ref[...],
                            preferred_element_type=jnp.float32)

    @pl.when(f == pl.num_programs(1) - 1)
    def _():
        o_ref[...] = acc_ref[...].astype(o_ref.dtype)


@functools.partial(jax.jit, static_argnames=("tm", "tf", "compute_dtype"))
def position_wise_ffn(x, w1, b1, w2, b2, *, tm=256, tf=512,
                      compute_dtype=jnp.bfloat16):
    """FFN(x) = ReLU(x @ W1 + b1) @ W2 + b2 for x: (B, S, d_model)."""
    B, S, d_model = x.shape
    d_ff = w1.shape[1]
    M = B * S
    out_dtype = x.dtype

    # Static, MXU-/lane-aligned tile sizes.
    tm = _round_up(max(int(tm), 8), 256)          # 256-aligned for v6e/v7x MXU
    d_model_p = _round_up(d_model, 128)
    M_p = _round_up(M, tm)
    tf = _round_up(max(int(tf), 128), 128)
    d_ff_p = _round_up(d_ff, 128)
    tf = min(tf, d_ff_p)
    d_ff_p = _round_up(d_ff_p, tf)                # tf must divide d_ff_p (exact: pads are zero)

    # Cast to MXU-native compute dtype; pad only when actually required
    # (padding weights per call is wasteful in production — hoist to init).
    x2d = x.reshape(M, d_model).astype(compute_dtype)
    if (M_p, d_model_p) != (M, d_model):
        x2d = jnp.pad(x2d, ((0, M_p - M), (0, d_model_p - d_model)))

    w1_p = w1.astype(compute_dtype)
    if (d_model_p, d_ff_p) != (d_model, d_ff):
        w1_p = jnp.pad(w1_p, ((0, d_model_p - d_model), (0, d_ff_p - d_ff)))
    w2_p = w2.astype(compute_dtype)
    if (d_ff_p, d_model_p) != (d_ff, d_model):
        w2_p = jnp.pad(w2_p, ((0, d_ff_p - d_ff), (0, d_model_p - d_model)))

    b1_p = b1.reshape(1, d_ff).astype(jnp.float32)
    if d_ff_p != d_ff:
        b1_p = jnp.pad(b1_p, ((0, 0), (0, d_ff_p - d_ff)))
    b2_p = b2.reshape(1, d_model).astype(jnp.float32)
    if d_model_p != d_model:
        b2_p = jnp.pad(b2_p, ((0, 0), (0, d_model_p - d_model)))

    cb = jnp.dtype(compute_dtype).itemsize
    ob = jnp.dtype(out_dtype).itemsize
    # VMEM footprint: double-buffered x/out/W1/W2/b1 tiles, single-buffered b2,
    # f32 accumulator scratch and the f32 (tm, tf) intermediate.
    footprint = (
        2 * tm * d_model_p * cb            # x tiles
        + 2 * tm * d_model_p * ob          # out tiles
        + 2 * d_model_p * tf * cb          # W1 tiles
        + 2 * tf * d_model_p * cb          # W2 tiles
        + 2 * tf * 4                       # b1 tiles
        + d_model_p * 4                    # b2 (resident)
        + tm * d_model_p * 4               # accumulator scratch
        + tm * tf * 4)                     # f32 intermediate h
    vmem_limit = int(min(max(footprint * 5 // 4, 32 * 1024 * 1024),
                         _vmem_budget_bytes()))

    cost = pl.CostEstimate(
        flops=4 * M_p * d_model_p * d_ff_p,
        transcendentals=0,
        bytes_accessed=int(M_p * d_model_p * (cb + ob)
                           + 2 * d_model_p * d_ff_p * cb
                           + d_ff_p * 4 + d_model_p * 4))

    grid = (M_p // tm, d_ff_p // tf)

    out2d = pl.pallas_call(
        ffn_kernel,
        out_shape=jax.ShapeDtypeStruct((M_p, d_model_p), out_dtype),
        grid_spec=pltpu.PrefetchScalarGridSpec(
            num_scalar_prefetch=0,
            grid=grid,
            in_specs=[
                pl.BlockSpec((tm, d_model_p), lambda i, f: (i, 0)),   # x rows
                pl.BlockSpec((d_model_p, tf), lambda i, f: (0, f)),   # W1 slab
                pl.BlockSpec((1, tf), lambda i, f: (0, f)),           # b1 slab
                pl.BlockSpec((tf, d_model_p), lambda i, f: (f, 0)),   # W2 slab
                pl.BlockSpec((1, d_model_p), lambda i, f: (0, 0),
                             pipeline_mode=pl.Buffered(1)),           # b2 (constant)
            ],
            out_specs=pl.BlockSpec((tm, d_model_p), lambda i, f: (i, 0)),
            scratch_shapes=[pltpu.VMEM((tm, d_model_p), jnp.float32)],
        ),
        compiler_params=pltpu.CompilerParams(
            dimension_semantics=("parallel", "arbitrary"),
            vmem_limit_bytes=vmem_limit),
        cost_estimate=cost,
    )(x2d, w1_p, b1_p, w2_p, b2_p)

    if (M_p, d_model_p) != (M, d_model):
        out2d = out2d[:M, :d_model]
    return out2d.reshape(B, S, d_model)


def init_params(key, d_model, d_ff, dtype=jnp.float32):
    """Deterministic init matching nn.Linear's U(-1/sqrt(fan_in), 1/sqrt(fan_in))."""
    k1, k2, k3, k4 = jax.random.split(key, 4)
    lim1 = 1.0 / jnp.sqrt(d_model)
    lim2 = 1.0 / jnp.sqrt(d_ff)
    # Stored as (in_features, out_features) so the kernel computes x @ W directly.
    w1 = jax.random.uniform(k1, (d_model, d_ff), dtype, -lim1, lim1)
    b1 = jax.random.uniform(k2, (d_ff,), dtype, -lim1, lim1)
    w2 = jax.random.uniform(k3, (d_ff, d_model), dtype, -lim2, lim2)
    b2 = jax.random.uniform(k4, (d_model,), dtype, -lim2, lim2)
    return w1, b1, w2, b2


if __name__ == "__main__":
    key = jax.random.PRNGKey(0)
    kx, kp = jax.random.split(key)

    batch, seq, d_model, d_ff = 2, 8, 32, 64
    x = jax.random.normal(kx, (batch, seq, d_model), jnp.float32)
    w1, b1, w2, b2 = init_params(kp, d_model, d_ff)

    out = position_wise_ffn(x, w1, b1, w2, b2)
    out = jax.block_until_ready(out)

    # Pure-JAX f32 reference (PyTorch module in eval mode). Kernel runs the
    # matmuls with bf16 operands + f32 accumulation, so use bf16-level tolerance.
    ref = jnp.maximum(x @ w1 + b1, 0.0) @ w2 + b2
    assert out.shape == (batch, seq, d_model)
    err = float(jnp.max(jnp.abs(out - ref)))
    assert jnp.allclose(out, ref, atol=2e-2, rtol=2e-2), f"max abs err={err}"

    print("KERNEL_OK")
</pallas_src>

<mosaic_0001>
module attributes {stable_mosaic.version = 11 : i64} {
  func.func @ffn_kernel(%arg0: i32, %arg1: i32, %arg2: memref<256x128xbf16, #tpu.memory_space<vmem>>, %arg3: memref<128x128xbf16, #tpu.memory_space<vmem>>, %arg4: memref<1x128xf32, #tpu.memory_space<vmem>>, %arg5: memref<128x128xbf16, #tpu.memory_space<vmem>>, %arg6: memref<1x128xf32, #tpu.memory_space<vmem>>, %arg7: memref<256x128xf32, #tpu.memory_space<vmem>>, %arg8: memref<256x128xf32, #tpu.memory_space<vmem>>) attributes {dimension_semantics = [#tpu.dimension_semantics<parallel>, #tpu.dimension_semantics<arbitrary>], iteration_bounds = array<i64: 1, 1>, scalar_prefetch = 0 : i64, scratch_operands = 1 : i64, tpu.core_type = #tpu.core_type<tc>, window_params = [{transform_indices = @transform_0, window_bounds = array<i64: 256, 128>}, {transform_indices = @transform_1, window_bounds = array<i64: 128, 128>}, {transform_indices = @transform_2, window_bounds = array<i64: 1, 128>}, {transform_indices = @transform_3, window_bounds = array<i64: 128, 128>}, {pipeline_mode = #tpu.pipeline_mode<synchronous>, transform_indices = @transform_4, window_bounds = array<i64: 1, 128>}, {transform_indices = @transform_5, window_bounds = array<i64: 256, 128>}]} {
    %c0_i32 = arith.constant 0 : i32
    %0 = arith.cmpi eq, %arg1, %c0_i32 : i32
    %1 = arith.extui %0 : i1 to i32
    %c0_i32_0 = arith.constant 0 : i32
    %2 = arith.cmpi ne, %1, %c0_i32_0 : i32
    scf.if %2 {
      %c0_16 = arith.constant 0 : index
      %c0_17 = arith.constant 0 : index
      %20 = vector.load %arg6[%c0_16, %c0_17] : memref<1x128xf32, #tpu.memory_space<vmem>>, vector<1x128xf32>
      %21 = vector.shape_cast %20 : vector<1x128xf32> to vector<1x128xf32>
      %22 = vector.broadcast %21 : vector<1x128xf32> to vector<256x128xf32>
      %c0_18 = arith.constant 0 : index
      %c0_19 = arith.constant 0 : index
      %23 = vector.load %arg8[%c0_18, %c0_19] : memref<256x128xf32, #tpu.memory_space<vmem>>, vector<256x128xf32>
      tpu.vector_store %arg8[%c0_18, %c0_19], %22 {strides = array<i32>} : memref<256x128xf32, #tpu.memory_space<vmem>>, vector<256x128xf32>,
    } else {
    }
    %c0 = arith.constant 0 : index
    %c0_1 = arith.constant 0 : index
    %3 = vector.load %arg2[%c0, %c0_1] : memref<256x128xbf16, #tpu.memory_space<vmem>>, vector<256x128xbf16>
    %c0_2 = arith.constant 0 : index
    %c0_3 = arith.constant 0 : index
    %4 = vector.load %arg3[%c0_2, %c0_3] : memref<128x128xbf16, #tpu.memory_space<vmem>>, vector<128x128xbf16>
    %cst = arith.constant dense<0.000000e+00> : vector<256x128xf32>
    %5 = tpu.matmul %3, %4, %cst {dimension_numbers = #tpu.dot_dimension_numbers<[1], [0], [0], [1], [0, 0, 1, 1], [], []>} : vector<256x128xbf16>, vector<128x128xbf16>, vector<256x128xf32> -> vector<256x128xf32>
    %c0_4 = arith.constant 0 : index
    %c0_5 = arith.constant 0 : index
    %6 = vector.load %arg4[%c0_4, %c0_5] : memref<1x128xf32, #tpu.memory_space<vmem>>, vector<1x128xf32>
    %7 = vector.broadcast %6 : vector<1x128xf32> to vector<256x128xf32>
    %8 = arith.addf %5, %7 : vector<256x128xf32>
    %cst_6 = arith.constant 0.000000e+00 : f32
    %9 = vector.broadcast %cst_6 : f32 to vector<256x128xf32>
    %10 = arith.maximumf %8, %9 : vector<256x128xf32>
    %c0_7 = arith.constant 0 : index
    %c0_8 = arith.constant 0 : index
    %11 = vector.load %arg8[%c0_7, %c0_8] : memref<256x128xf32, #tpu.memory_space<vmem>>, vector<256x128xf32>
    %12 = arith.truncf %10 : vector<256x128xf32> to vector<256x128xbf16>
    %c0_9 = arith.constant 0 : index
    %c0_10 = arith.constant 0 : index
    %13 = vector.load %arg5[%c0_9, %c0_10] : memref<128x128xbf16, #tpu.memory_space<vmem>>, vector<128x128xbf16>
    %cst_11 = arith.constant dense<0.000000e+00> : vector<256x128xf32>
    %14 = tpu.matmul %12, %13, %cst_11 {dimension_numbers = #tpu.dot_dimension_numbers<[1], [0], [0], [1], [0, 0, 1, 1], [], []>} : vector<256x128xbf16>, vector<128x128xbf16>, vector<256x128xf32> -> vector<256x128xf32>
    %15 = arith.addf %11, %14 : vector<256x128xf32>
    %c0_12 = arith.constant 0 : index
    %c0_13 = arith.constant 0 : index
    %16 = vector.load %arg8[%c0_12, %c0_13] : memref<256x128xf32, #tpu.memory_space<vmem>>, vector<256x128xf32>
    tpu.vector_store %arg8[%c0_12, %c0_13], %15 {strides = array<i32>} : memref<256x128xf32, #tpu.memory_space<vmem>>, vector<256x128xf32>,
    %c0_i32_14 = arith.constant 0 : i32
    %17 = arith.cmpi eq, %arg1, %c0_i32_14 : i32
    %18 = arith.extui %17 : i1 to i32
    %c0_i32_15 = arith.constant 0 : i32
    %19 = arith.cmpi ne, %18, %c0_i32_15 : i32
    scf.if %19 {
      %c0_16 = arith.constant 0 : index
      %c0_17 = arith.constant 0 : index
      %20 = vector.load %arg8[%c0_16, %c0_17] : memref<256x128xf32, #tpu.memory_space<vmem>>, vector<256x128xf32>
      %c0_18 = arith.constant 0 : index
      %c0_19 = arith.constant 0 : index
      %21 = vector.load %arg7[%c0_18, %c0_19] : memref<256x128xf32, #tpu.memory_space<vmem>>, vector<256x128xf32>
      tpu.vector_store %arg7[%c0_18, %c0_19], %20 {strides = array<i32>} : memref<256x128xf32, #tpu.memory_space<vmem>>, vector<256x128xf32>,
    } else {
    }
    return
  }
  func.func @transform_0(%arg0: i32, %arg1: i32) -> (i32, i32) {
    %c0_i32 = arith.constant 0 : i32
    %c0_i32_0 = arith.constant 0 : i32
    return %arg0, %c0_i32 : i32, i32
  }
  func.func @transform_1(%arg0: i32, %arg1: i32) -> (i32, i32) {
    %c0_i32 = arith.constant 0 : i32
    %c0_i32_0 = arith.constant 0 : i32
    return %c0_i32, %arg1 : i32, i32
  }
  func.func @transform_2(%arg0: i32, %arg1: i32) -> (i32, i32) {
    %c0_i32 = arith.constant 0 : i32
    %c0_i32_0 = arith.constant 0 : i32
    return %c0_i32, %arg1 : i32, i32
  }
  func.func @transform_3(%arg0: i32, %arg1: i32) -> (i32, i32) {
    %c0_i32 = arith.constant 0 : i32
    %c0_i32_0 = arith.constant 0 : i32
    return %arg1, %c0_i32 : i32, i32
  }
  func.func @transform_4(%arg0: i32, %arg1: i32) -> (i32, i32) {
    %c0_i32 = arith.constant 0 : i32
    %c0_i32_0 = arith.constant 0 : i32
    %c0_i32_1 = arith.constant 0 : i32
    return %c0_i32, %c0_i32_0 : i32, i32
  }
  func.func @transform_5(%arg0: i32, %arg1: i32) -> (i32, i32) {
    %c0_i32 = arith.constant 0 : i32
    %c0_i32_0 = arith.constant 0 : i32
    return %arg0, %c0_i32 : i32, i32
  }
}

</mosaic_0001>

<llo_original>
// kernel: position_wise_ffn.1
$region0: #{position_wise_ffn.1}
  #allocation0 [shape = 'u32[]', space=smem, size = 0x4, offset = 0x4, fixed_abs, tag = 'smem constant byte address 0x4 - core index']
  #allocation1 [shape = 'u32[144,128]{1,0:T(1,128)}', space=vmem, size = 0x12000, scoped, tag = 'internal scratch']
  #allocation2 [shape = 'f32[256,128]{1,0:T(8,128)}', space=vmem, size = 0x20000, scoped, tag = 'scratch operand']
  %s0 = inlined_call_operand.vmem [shape: bf16[256,128], index: 0, kind: input, shape index: {}]
  %s1 = inlined_call_operand.vmem [shape: bf16[128,128], index: 1, kind: input, shape index: {}]
  %s2 = inlined_call_operand.vmem [shape: f32[1,128], index: 2, kind: input, shape index: {}]
  %s3 = inlined_call_operand.vmem [shape: bf16[128,128], index: 3, kind: input, shape index: {}]
  %s4 = inlined_call_operand.vmem [shape: f32[1,128], index: 4, kind: input, shape index: {}]
  %s5 = inlined_call_operand.vmem [shape: f32[256,128], index: 5, kind: output, shape index: {}]
  %s6 = sld [smem:[#allocation0]]
  $region38: #{position_wise_ffn.1} parent=0
    _
  %s8 = ssub.s32 1, %s6
  %s9 = scalar_select 0, %s8, %s6
  // Predicated region
  $region2: #{position_wise_ffn.1} parent=0 // pred_check
    _
  $region3: #{position_wise_ffn.1} parent=0 // pred_check_branch
    %11 = sbr.rel (0) target = $region5
  $region4: #{position_wise_ffn.1} parent=0 // pred_region
    _
  $region5: #{position_wise_ffn.1} parent=0 // pred_fallthru
    _
  // Predicated region
  $region6: #{position_wise_ffn.1} parent=0 // pred_check
    _
  $region7: #{position_wise_ffn.1} parent=0 // pred_check_branch
    %13 = sbr.rel (0) target = $region9
  $region8: #{position_wise_ffn.1} parent=0 // pred_region
    _
  $region9: #{position_wise_ffn.1} parent=0 // pred_fallthru
    _
  // Predicated region
  $region10: #{position_wise_ffn.1} parent=0 // pred_check
    _
  $region11: #{position_wise_ffn.1} parent=0 // pred_check_branch
    %15 = sbr.rel (0) target = $region13
  $region12: #{position_wise_ffn.1} parent=0 // pred_region
    _
  $region13: #{position_wise_ffn.1} parent=0 // pred_fallthru
    _
  // Predicated region
  $region14: #{position_wise_ffn.1} parent=0 // pred_check
    _
  $region15: #{position_wise_ffn.1} parent=0 // pred_check_branch
    %17 = sbr.rel (0) target = $region17
  $region16: #{position_wise_ffn.1} parent=0 // pred_region
    _
  $region17: #{position_wise_ffn.1} parent=0 // pred_fallthru
    _
  // Predicated region
  $region18: #{position_wise_ffn.1} parent=0 // pred_check
    _
  $region19: #{position_wise_ffn.1} parent=0 // pred_check_branch
    %19 = sbr.rel (0) target = $region21
  $region20: #{position_wise_ffn.1} parent=0 // pred_region
    _
  $region21: #{position_wise_ffn.1} parent=0 // pred_fallthru
    _
  %p21 = scmp.eq.s32.totalorder 0, 0
  // Predicated region
  $region22: #{position_wise_ffn.1} parent=0 // pred_check
    %p22 = pneg %p21
  $region23: #{position_wise_ffn.1} parent=0 // pred_check_branch
    %24 = sbr.rel (%p22) target = $region25
  $region24: #{position_wise_ffn.1} parent=0 // pred_region
    %v25 = vld [vmem:[%s4] sm:$0x1]
    %v27 = vlaneseq
    %v28 = vshrl.u32 %v27, 7
    %v29 = vsub.s32 0, %v28
    %v30 = vrot.slane %v25, %v29
    %32 = vst [vmem:[#allocation2] sm:$0xff] %v30
    %33 = vst [vmem:[#allocation2 + $0x8] sm:$0xff] %v30
    %34 = vst [vmem:[#allocation2 + $0x10] sm:$0xff] %v30
    %35 = vst [vmem:[#allocation2 + $0x18] sm:$0xff] %v30
    %36 = vst [vmem:[#allocation2 + $0x20] sm:$0xff] %v30
    %37 = vst [vmem:[#allocation2 + $0x28] sm:$0xff] %v30
    %38 = vst [vmem:[#allocation2 + $0x30] sm:$0xff] %v30
    %39 = vst [vmem:[#allocation2 + $0x38] sm:$0xff] %v30
    %40 = vst [vmem:[#allocation2 + $0x40] sm:$0xff] %v30
    %41 = vst [vmem:[#allocation2 + $0x48] sm:$0xff] %v30
    %42 = vst [vmem:[#allocation2 + $0x50] sm:$0xff] %v30
    %43 = vst [vmem:[#allocation2 + $0x58] sm:$0xff] %v30
    %44 = vst [vmem:[#allocation2 + $0x60] sm:$0xff] %v30
    %45 = vst [vmem:[#allocation2 + $0x68] sm:$0xff] %v30
    %46 = vst [vmem:[#allocation2 + $0x70] sm:$0xff] %v30
    %47 = vst [vmem:[#allocation2 + $0x78] sm:$0xff] %v30
    %48 = vst [vmem:[#allocation2 + $0x80] sm:$0xff] %v30
    %49 = vst [vmem:[#allocation2 + $0x88] sm:$0xff] %v30
    %50 = vst [vmem:[#allocation2 + $0x90] sm:$0xff] %v30
    %51 = vst [vmem:[#allocation2 + $0x98] sm:$0xff] %v30
    %52 = vst [vmem:[#allocation2 + $0xa0] sm:$0xff] %v30
    %53 = vst [vmem:[#allocation2 + $0xa8] sm:$0xff] %v30
    %54 = vst [vmem:[#allocation2 + $0xb0] sm:$0xff] %v30
    %55 = vst [vmem:[#allocation2 + $0xb8] sm:$0xff] %v30
    %56 = vst [vmem:[#allocation2 + $0xc0] sm:$0xff] %v30
    %57 = vst [vmem:[#allocation2 + $0xc8] sm:$0xff] %v30
    %58 = vst [vmem:[#allocation2 + $0xd0] sm:$0xff] %v30
    %59 = vst [vmem:[#allocation2 + $0xd8] sm:$0xff] %v30
    %60 = vst [vmem:[#allocation2 + $0xe0] sm:$0xff] %v30
    %61 = vst [vmem:[#allocation2 + $0xe8] sm:$0xff] %v30
    %62 = vst [vmem:[#allocation2 + $0xf0] sm:$0xff] %v30
    %63 = vst [vmem:[#allocation2 + $0xf8] sm:$0xff] %v30
  $region25: #{position_wise_ffn.1} parent=0 // pred_fallthru
    _
  %v64 = vld [vmem:[%s0] sm:$0xf]
  %v65 = vld [vmem:[%s0 + $0x4] sm:$0xf]
  %v66 = vld [vmem:[%s0 + $0x8] sm:$0xf]
  %v67 = vld [vmem:[%s0 + $0xc] sm:$0xf]
  %v68 = vld [vmem:[%s0 + $0x10] sm:$0xf]
  %v69 = vld [vmem:[%s0 + $0x14] sm:$0xf]
  %v70 = vld [vmem:[%s0 + $0x18] sm:$0xf]
  %v71 = vld [vmem:[%s0 + $0x1c] sm:$0xf]
  %v72 = vld [vmem:[%s0 + $0x20] sm:$0xf]
  %v73 = vld [vmem:[%s0 + $0x24] sm:$0xf]
  %v74 = vld [vmem:[%s0 + $0x28] sm:$0xf]
  %v75 = vld [vmem:[%s0 + $0x2c] sm:$0xf]
  %v76 = vld [vmem:[%s0 + $0x30] sm:$0xf]
  %v77 = vld [vmem:[%s0 + $0x34] sm:$0xf]
  %v78 = vld [vmem:[%s0 + $0x38] sm:$0xf]
  %v79 = vld [vmem:[%s0 + $0x3c] sm:$0xf]
  %v80 = vld [vmem:[%s0 + $0x40] sm:$0xf]
  %v81 = vld [vmem:[%s0 + $0x44] sm:$0xf]
  %v82 = vld [vmem:[%s0 + $0x48] sm:$0xf]
  %v83 = vld [vmem:[%s0 + $0x4c] sm:$0xf]
  %v84 = vld [vmem:[%s0 + $0x50] sm:$0xf]
  %v85 = vld [vmem:[%s0 + $0x54] sm:$0xf]
  %v86 = vld [vmem:[%s0 + $0x58] sm:$0xf]
  %v87 = vld [vmem:[%s0 + $0x5c] sm:$0xf]
  %v88 = vld [vmem:[%s0 + $0x60] sm:$0xf]
  %v89 = vld [vmem:[%s0 + $0x64] sm:$0xf]
  %v90 = vld [vmem:[%s0 + $0x68] sm:$0xf]
  %v91 = vld [vmem:[%s0 + $0x6c] sm:$0xf]
  %v92 = vld [vmem:[%s0 + $0x70] sm:$0xf]
  %v93 = vld [vmem:[%s0 + $0x74] sm:$0xf]
  %v94 = vld [vmem:[%s0 + $0x78] sm:$0xf]
  %v95 = vld [vmem:[%s0 + $0x7c] sm:$0xf]
  %v96 = vld [vmem:[%s1] sm:$0xf]
  %v97 = vld [vmem:[%s1 + $0x4] sm:$0xf]
  %v98 = vld [vmem:[%s1 + $0x8] sm:$0xf]
  %v99 = vld [vmem:[%s1 + $0xc] sm:$0xf]
  %v100 = vld [vmem:[%s1 + $0x10] sm:$0xf]
  %v101 = vld [vmem:[%s1 + $0x14] sm:$0xf]
  %v102 = vld [vmem:[%s1 + $0x18] sm:$0xf]
  %v103 = vld [vmem:[%s1 + $0x1c] sm:$0xf]
  %v104 = vld [vmem:[%s1 + $0x20] sm:$0xf]
  %v105 = vld [vmem:[%s1 + $0x24] sm:$0xf]
  %v106 = vld [vmem:[%s1 + $0x28] sm:$0xf]
  %v107 = vld [vmem:[%s1 + $0x2c] sm:$0xf]
  %v108 = vld [vmem:[%s1 + $0x30] sm:$0xf]
  %v109 = vld [vmem:[%s1 + $0x34] sm:$0xf]
  %v110 = vld [vmem:[%s1 + $0x38] sm:$0xf]
  %v111 = vld [vmem:[%s1 + $0x3c] sm:$0xf]
  %v112 = vld [vmem:[%s2] sm:$0x1]
  %v114 = vlaneseq
  %v115 = vshrl.u32 %v114, 7
  %v116 = vsub.s32 0, %v115
  %v117 = vrot.slane %v112, %v116
  %v151 = vunpack.c.l.b16 %v64
  %v152 = vunpack.c.l.b16 %v65
  %v153 = vunpack.c.l.b16 %v66
  %v154 = vunpack.c.l.b16 %v67
  %v155 = vunpack.c.l.b16 %v68
  %v156 = vunpack.c.l.b16 %v69
  %v157 = vunpack.c.l.b16 %v70
  %v158 = vunpack.c.l.b16 %v71
  %v159 = vunpack.c.l.b16 %v72
  %v160 = vunpack.c.l.b16 %v73
  %v161 = vunpack.c.l.b16 %v74
  %v162 = vunpack.c.l.b16 %v75
  %v163 = vunpack.c.l.b16 %v76
  %v164 = vunpack.c.l.b16 %v77
  %v165 = vunpack.c.l.b16 %v78
  %v166 = vunpack.c.l.b16 %v79
  %v167 = vunpack.c.l.b16 %v80
  %v168 = vunpack.c.l.b16 %v81
  %v169 = vunpack.c.l.b16 %v82
  %v170 = vunpack.c.l.b16 %v83
  %v171 = vunpack.c.l.b16 %v84
  %v172 = vunpack.c.l.b16 %v85
  %v173 = vunpack.c.l.b16 %v86
  %v174 = vunpack.c.l.b16 %v87
  %v175 = vunpack.c.l.b16 %v88
  %v176 = vunpack.c.l.b16 %v89
  %v177 = vunpack.c.l.b16 %v90
  %v178 = vunpack.c.l.b16 %v91
  %v179 = vunpack.c.l.b16 %v92
  %v180 = vunpack.c.l.b16 %v93
  %v181 = vunpack.c.l.b16 %v94
  %v182 = vunpack.c.l.b16 %v95
  %v183 = vpack.c.b16 %v152, %v151
  %v184 = vpack.c.b16 %v154, %v153
  %v185 = vpack.c.b16 %v156, %v155
  %v186 = vpack.c.b16 %v158, %v157
  %v187 = vpack.c.b16 %v160, %v159
  %v188 = vpack.c.b16 %v162, %v161
  %v189 = vpack.c.b16 %v164, %v163
  %v190 = vpack.c.b16 %v166, %v165
  %v191 = vpack.c.b16 %v168, %v167
  %v192 = vpack.c.b16 %v170, %v169
  %v193 = vpack.c.b16 %v172, %v171
  %v194 = vpack.c.b16 %v174, %v173
  %v195 = vpack.c.b16 %v176, %v175
  %v196 = vpack.c.b16 %v178, %v177
  %v197 = vpack.c.b16 %v180, %v179
  %v198 = vpack.c.b16 %v182, %v181
  %v231 = vunpack.c.l.b16 %v96
  %v232 = vunpack.c.l.b16 %v97
  %v233 = vunpack.c.l.b16 %v98
  %v234 = vunpack.c.l.b16 %v99
  %v235 = vunpack.c.l.b16 %v100
  %v236 = vunpack.c.l.b16 %v101
  %v237 = vunpack.c.l.b16 %v102
  %v238 = vunpack.c.l.b16 %v103
  %v239 = vunpack.c.l.b16 %v104
  %v240 = vunpack.c.l.b16 %v105
  %v241 = vunpack.c.l.b16 %v106
  %v242 = vunpack.c.l.b16 %v107
  %v243 = vunpack.c.l.b16 %v108
  %v244 = vunpack.c.l.b16 %v109
  %v245 = vunpack.c.l.b16 %v110
  %v246 = vunpack.c.l.b16 %v111
  %v247 = vpack.c.b16 %v232, %v231
  %v248 = vpack.c.b16 %v234, %v233
  %v249 = vpack.c.b16 %v236, %v235
  %v250 = vpack.c.b16 %v238, %v237
  %v251 = vpack.c.b16 %v240, %v239
  %v252 = vpack.c.b16 %v242, %v241
  %v253 = vpack.c.b16 %v244, %v243
  %v254 = vpack.c.b16 %v246, %v245
  %263 = vmatprep.subr.bf16.mxu0 0
  %264 = vmatpush1.bf16.msra.mxu0 %v247
  %265 = vmatprep.subr.bf16.mxu0 0
  %266 = vmatpush1.bf16.msra.mxu0 %v248
  %267 = vmatprep.subr.bf16.mxu0 0
  %268 = vmatpush1.bf16.msra.mxu0 %v249
  %269 = vmatprep.subr.bf16.mxu0 0
  %270 = vmatpush1.bf16.msra.mxu0 %v250
  %271 = vmatprep.subr.bf16.mxu0 0
  %272 = vmatpush1.bf16.msra.mxu0 %v251
  %273 = vmatprep.subr.bf16.mxu0 0
  %274 = vmatpush1.bf16.msra.mxu0 %v252
  %275 = vmatprep.subr.bf16.mxu0 0
  %276 = vmatpush1.bf16.msra.mxu0 %v253
  %277 = vmatprep.subr.bf16.mxu0 0
  %278 = vmatpush1.bf16.msra.mxu0 %v254
  %279 = vmatprep.subr.bf16.mxu0 0
  %280 = vmatpush1.bf16.msra.mxu0 0
  %281 = vmatprep.subr.bf16.mxu0 0
  %282 = vmatpush1.bf16.msra.mxu0 0
  %283 = vmatprep.subr.bf16.mxu0 0
  %284 = vmatpush1.bf16.msra.mxu0 0
  %285 = vmatprep.subr.bf16.mxu0 0
  %286 = vmatpush1.bf16.msra.mxu0 0
  %287 = vmatprep.subr.bf16.mxu0 0
  %288 = vmatpush1.bf16.msra.mxu0 0
  %289 = vmatprep.subr.bf16.mxu0 0
  %290 = vmatpush1.bf16.msra.mxu0 0
  %291 = vmatprep.subr.bf16.mxu0 0
  %292 = vmatpush1.bf16.msra.mxu0 0
  %293 = vmatprep.subr.bf16.mxu0 0
  %294 = vmatpush1.bf16.msra.mxu0 0
  %295 = vmatprep.mubr.bf16.mxu0 0
  %296 = vmatmul.mubr.bf16.gmra.mrb[0].mxu0 %v183
  %v297 = vpop.f32.mrb[0].mxu0
  %v298 = vadd.f32 %v117, %v297
  %v299 = vpop.f32.mrb[0].mxu0
  %v300 = vpop.f32.mrb[0].mxu0
  %v301 = vadd.f32 %v117, %v300
  %v302 = vpop.f32.mrb[0].mxu0
  %303 = vmatprep.mubr.bf16.mxu0 0
  %304 = vmatmul.mubr.bf16.gmra.mrb[0].mxu0 %v184
  %v305 = vpop.f32.mrb[0].mxu0
  %v306 = vadd.f32 %v117, %v305
  %v307 = vpop.f32.mrb[0].mxu0
  %v308 = vpop.f32.mrb[0].mxu0
  %v309 = vadd.f32 %v117, %v308
  %v310 = vpop.f32.mrb[0].mxu0
  %311 = vmatprep.mubr.bf16.mxu0 0
  %312 = vmatmul.mubr.bf16.gmra.mrb[0].mxu0 %v185
  %v313 = vpop.f32.mrb[0].mxu0
  %v314 = vadd.f32 %v117, %v313
  %v315 = vpop.f32.mrb[0].mxu0
  %v316 = vpop.f32.mrb[0].mxu0
  %v317 = vadd.f32 %v117, %v316
  %v318 = vpop.f32.mrb[0].mxu0
  %319 = vmatprep.mubr.bf16.mxu0 0
  %320 = vmatmul.mubr.bf16.gmra.mrb[0].mxu0 %v186
  %v321 = vpop.f32.mrb[0].mxu0
  %v322 = vadd.f32 %v117, %v321
  %v323 = vpop.f32.mrb[0].mxu0
  %v324 = vpop.f32.mrb[0].mxu0
  %v325 = vadd.f32 %v117, %v324
  %v326 = vpop.f32.mrb[0].mxu0
  %327 = vmatprep.mubr.bf16.mxu0 0
  %328 = vmatmul.mubr.bf16.gmra.mrb[0].mxu0 %v187
  %v329 = vpop.f32.mrb[0].mxu0
  %v330 = vadd.f32 %v117, %v329
  %v331 = vpop.f32.mrb[0].mxu0
  %v332 = vpop.f32.mrb[0].mxu0
  %v333 = vadd.f32 %v117, %v332
  %v334 = vpop.f32.mrb[0].mxu0
  %335 = vmatprep.mubr.bf16.mxu0 0
  %336 = vmatmul.mubr.bf16.gmra.mrb[0].mxu0 %v188
  %v337 = vpop.f32.mrb[0].mxu0
  %v338 = vadd.f32 %v117, %v337
  %v339 = vpop.f32.mrb[0].mxu0
  %v340 = vpop.f32.mrb[0].mxu0
  %v341 = vadd.f32 %v117, %v340
  %v342 = vpop.f32.mrb[0].mxu0
  %343 = vmatprep.mubr.bf16.mxu0 0
  %344 = vmatmul.mubr.bf16.gmra.mrb[0].mxu0 %v189
  %v345 = vpop.f32.mrb[0].mxu0
  %v346 = vadd.f32 %v117, %v345
  %v347 = vpop.f32.mrb[0].mxu0
  %v348 = vpop.f32.mrb[0].mxu0
  %v349 = vadd.f32 %v117, %v348
  %v350 = vpop.f32.mrb[0].mxu0
  %351 = vmatprep.mubr.bf16.mxu0 0
  %352 = vmatmul.mubr.bf16.gmra.mrb[0].mxu0 %v190
  %v353 = vpop.f32.mrb[0].mxu0
  %v354 = vadd.f32 %v117, %v353
  %v355 = vpop.f32.mrb[0].mxu0
  %v356 = vpop.f32.mrb[0].mxu0
  %v357 = vadd.f32 %v117, %v356
  %v358 = vpop.f32.mrb[0].mxu0
  %359 = vmatprep.mubr.bf16.mxu0 0
  %360 = vmatmul.mubr.bf16.gmra.mrb[0].mxu0 %v191
  %v361 = vpop.f32.mrb[0].mxu0
  %v362 = vadd.f32 %v117, %v361
  %v363 = vpop.f32.mrb[0].mxu0
  %v364 = vpop.f32.mrb[0].mxu0
  %v365 = vadd.f32 %v117, %v364
  %v366 = vpop.f32.mrb[0].mxu0
  %367 = vmatprep.mubr.bf16.mxu0 0
  %368 = vmatmul.mubr.bf16.gmra.mrb[0].mxu0 %v192
  %v369 = vpop.f32.mrb[0].mxu0
  %v370 = vadd.f32 %v117, %v369
  %v371 = vpop.f32.mrb[0].mxu0
  %v372 = vpop.f32.mrb[0].mxu0
  %v373 = vadd.f32 %v117, %v372
  %v374 = vpop.f32.mrb[0].mxu0
  %375 = vmatprep.mubr.bf16.mxu0 0
  %376 = vmatmul.mubr.bf16.gmra.mrb[0].mxu0 %v193
  %v377 = vpop.f32.mrb[0].mxu0
  %v378 = vadd.f32 %v117, %v377
  %v379 = vpop.f32.mrb[0].mxu0
  %v380 = vpop.f32.mrb[0].mxu0
  %v381 = vadd.f32 %v117, %v380
  %v382 = vpop.f32.mrb[0].mxu0
  %383 = vmatprep.mubr.bf16.mxu0 0
  %384 = vmatmul.mubr.bf16.gmra.mrb[0].mxu0 %v194
  %v385 = vpop.f32.mrb[0].mxu0
  %v386 = vadd.f32 %v117, %v385
  %v387 = vpop.f32.mrb[0].mxu0
  %v388 = vpop.f32.mrb[0].mxu0
  %v389 = vadd.f32 %v117, %v388
  %v390 = vpop.f32.mrb[0].mxu0
  %391 = vmatprep.mubr.bf16.mxu0 0
  %392 = vmatmul.mubr.bf16.gmra.mrb[0].mxu0 %v195
  %v393 = vpop.f32.mrb[0].mxu0
  %v394 = vadd.f32 %v117, %v393
  %v395 = vpop.f32.mrb[0].mxu0
  %v396 = vpop.f32.mrb[0].mxu0
  %v397 = vadd.f32 %v117, %v396
  %v398 = vpop.f32.mrb[0].mxu0
  %399 = vmatprep.mubr.bf16.mxu0 0
  %400 = vmatmul.mubr.bf16.gmra.mrb[0].mxu0 %v196
  %v401 = vpop.f32.mrb[0].mxu0
  %v402 = vadd.f32 %v117, %v401
  %v403 = vpop.f32.mrb[0].mxu0
  %v404 = vpop.f32.mrb[0].mxu0
  %v405 = vadd.f32 %v117, %v404
  %v406 = vpop.f32.mrb[0].mxu0
  %407 = vmatprep.mubr.bf16.mxu0 0
  %408 = vmatmul.mubr.bf16.gmra.mrb[0].mxu0 %v197
  %v409 = vpop.f32.mrb[0].mxu0
  %v410 = vadd.f32 %v117, %v409
  %v411 = vpop.f32.mrb[0].mxu0
  %v412 = vpop.f32.mrb[0].mxu0
  %v413 = vadd.f32 %v117, %v412
  %v414 = vpop.f32.mrb[0].mxu0
  %415 = vmatprep.mubr.bf16.mxu0 0
  %416 = vmatmul.mubr.bf16.gmra.mrb[0].mxu0 %v198
  %v417 = vpop.f32.mrb[0].mxu0
  %v418 = vadd.f32 %v117, %v417
  %v419 = vpop.f32.mrb[0].mxu0
  %v420 = vpop.f32.mrb[0].mxu0
  %v421 = vadd.f32 %v117, %v420
  %v422 = vpop.f32.mrb[0].mxu0
  %423 = vdwg.mxu0
  %v424 = vmax.f32 %v298, 0.0
  %v425 = vmax.f32 %v301, 0.0
  %v426 = vmax.f32 %v306, 0.0
  %v427 = vmax.f32 %v309, 0.0
  %v428 = vmax.f32 %v314, 0.0
  %v429 = vmax.f32 %v317, 0.0
  %v430 = vmax.f32 %v322, 0.0
  %v431 = vmax.f32 %v325, 0.0
  %v432 = vmax.f32 %v330, 0.0
  %v433 = vmax.f32 %v333, 0.0
  %v434 = vmax.f32 %v338, 0.0
  %v435 = vmax.f32 %v341, 0.0
  %v436 = vmax.f32 %v346, 0.0
  %v437 = vmax.f32 %v349, 0.0
  %v438 = vmax.f32 %v354, 0.0
  %v439 = vmax.f32 %v357, 0.0
  %v440 = vmax.f32 %v362, 0.0
  %v441 = vmax.f32 %v365, 0.0
  %v442 = vmax.f32 %v370, 0.0
  %v443 = vmax.f32 %v373, 0.0
  %v444 = vmax.f32 %v378, 0.0
  %v445 = vmax.f32 %v381, 0.0
  %v446 = vmax.f32 %v386, 0.0
  %v447 = vmax.f32 %v389, 0.0
  %v448 = vmax.f32 %v394, 0.0
  %v449 = vmax.f32 %v397, 0.0
  %v450 = vmax.f32 %v402, 0.0
  %v451 = vmax.f32 %v405, 0.0
  %v452 = vmax.f32 %v410, 0.0
  %v453 = vmax.f32 %v413, 0.0
  %v454 = vmax.f32 %v418, 0.0
  %v455 = vmax.f32 %v421, 0.0
  %v456 = vld [vmem:[#allocation2] sm:$0xff]
  %v457 = vld [vmem:[#allocation2 + $0x8] sm:$0xff]
  %v458 = vld [vmem:[#allocation2 + $0x10] sm:$0xff]
  %v459 = vld [vmem:[#allocation2 + $0x18] sm:$0xff]
  %v460 = vld [vmem:[#allocation2 + $0x20] sm:$0xff]
  %v461 = vld [vmem:[#allocation2 + $0x28] sm:$0xff]
  %v462 = vld [vmem:[#allocation2 + $0x30] sm:$0xff]
  %v463 = vld [vmem:[#allocation2 + $0x38] sm:$0xff]
  %v464 = vld [vmem:[#allocation2 + $0x40] sm:$0xff]
  %v465 = vld [vmem:[#allocation2 + $0x48] sm:$0xff]
  %v466 = vld [vmem:[#allocation2 + $0x50] sm:$0xff]
  %v467 = vld [vmem:[#allocation2 + $0x58] sm:$0xff]
  %v468 = vld [vmem:[#allocation2 + $0x60] sm:$0xff]
  %v469 = vld [vmem:[#allocation2 + $0x68] sm:$0xff]
  %v470 = vld [vmem:[#allocation2 + $0x70] sm:$0xff]
  %v471 = vld [vmem:[#allocation2 + $0x78] sm:$0xff]
  %v472 = vld [vmem:[#allocation2 + $0x80] sm:$0xff]
  %v473 = vld [vmem:[#allocation2 + $0x88] sm:$0xff]
  %v474 = vld [vmem:[#allocation2 + $0x90] sm:$0xff]
  %v475 = vld [vmem:[#allocation2 + $0x98] sm:$0xff]
  %v476 = vld [vmem:[#allocation2 + $0xa0] sm:$0xff]
  %v477 = vld [vmem:[#allocation2 + $0xa8] sm:$0xff]
  %v478 = vld [vmem:[#allocation2 + $0xb0] sm:$0xff]
  %v479 = vld [vmem:[#allocation2 + $0xb8] sm:$0xff]
  %v480 = vld [vmem:[#allocation2 + $0xc0] sm:$0xff]
  %v481 = vld [vmem:[#allocation2 + $0xc8] sm:$0xff]
  %v482 = vld [vmem:[#allocation2 + $0xd0] sm:$0xff]
  %v483 = vld [vmem:[#allocation2 + $0xd8] sm:$0xff]
  %v484 = vld [vmem:[#allocation2 + $0xe0] sm:$0xff]
  %v485 = vld [vmem:[#allocation2 + $0xe8] sm:$0xff]
  %v486 = vld [vmem:[#allocation2 + $0xf0] sm:$0xff]
  %v487 = vld [vmem:[#allocation2 + $0xf8] sm:$0xff]
  %v488 = vpack.c.bf16 %v425, %v424
  %v489 = vpack.c.bf16 %v427, %v426
  %v490 = vpack.c.bf16 %v429, %v428
  %v491 = vpack.c.bf16 %v431, %v430
  %v492 = vpack.c.bf16 %v433, %v432
  %v493 = vpack.c.bf16 %v435, %v434
  %v494 = vpack.c.bf16 %v437, %v436
  %v495 = vpack.c.bf16 %v439, %v438
  %v496 = vpack.c.bf16 %v441, %v440
  %v497 = vpack.c.bf16 %v443, %v442
  %v498 = vpack.c.bf16 %v445, %v444
  %v499 = vpack.c.bf16 %v447, %v446
  %v500 = vpack.c.bf16 %v449, %v448
  %v501 = vpack.c.bf16 %v451, %v450
  %v502 = vpack.c.bf16 %v453, %v452
  %v503 = vpack.c.bf16 %v455, %v454
  %v504 = vld [vmem:[%s3] sm:$0xf]
  %v505 = vld [vmem:[%s3 + $0x4] sm:$0xf]
  %v506 = vld [vmem:[%s3 + $0x8] sm:$0xf]
  %v507 = vld [vmem:[%s3 + $0xc] sm:$0xf]
  %v508 = vld [vmem:[%s3 + $0x10] sm:$0xf]
  %v509 = vld [vmem:[%s3 + $0x14] sm:$0xf]
  %v510 = vld [vmem:[%s3 + $0x18] sm:$0xf]
  %v511 = vld [vmem:[%s3 + $0x1c] sm:$0xf]
  %v512 = vld [vmem:[%s3 + $0x20] sm:$0xf]
  %v513 = vld [vmem:[%s3 + $0x24] sm:$0xf]
  %v514 = vld [vmem:[%s3 + $0x28] sm:$0xf]
  %v515 = vld [vmem:[%s3 + $0x2c] sm:$0xf]
  %v516 = vld [vmem:[%s3 + $0x30] sm:$0xf]
  %v517 = vld [vmem:[%s3 + $0x34] sm:$0xf]
  %v518 = vld [vmem:[%s3 + $0x38] sm:$0xf]
  %v519 = vld [vmem:[%s3 + $0x3c] sm:$0xf]
  %v536 = vunpack.c.l.b16 %v504
  %v537 = vunpack.c.l.b16 %v505
  %v538 = vunpack.c.l.b16 %v506
  %v539 = vunpack.c.l.b16 %v507
  %v540 = vunpack.c.l.b16 %v508
  %v541 = vunpack.c.l.b16 %v509
  %v542 = vunpack.c.l.b16 %v510
  %v543 = vunpack.c.l.b16 %v511
  %v544 = vunpack.c.l.b16 %v512
  %v545 = vunpack.c.l.b16 %v513
  %v546 = vunpack.c.l.b16 %v514
  %v547 = vunpack.c.l.b16 %v515
  %v548 = vunpack.c.l.b16 %v516
  %v549 = vunpack.c.l.b16 %v517
  %v550 = vunpack.c.l.b16 %v518
  %v551 = vunpack.c.l.b16 %v519
  %v552 = vpack.c.b16 %v537, %v536
  %v553 = vpack.c.b16 %v539, %v538
  %v554 = vpack.c.b16 %v541, %v540
  %v555 = vpack.c.b16 %v543, %v542
  %v556 = vpack.c.b16 %v545, %v544
  %v557 = vpack.c.b16 %v547, %v546
  %v558 = vpack.c.b16 %v549, %v548
  %v559 = vpack.c.b16 %v551, %v550
  %568 = vmatprep.subr.bf16.mxu0 0
  %569 = vmatpush1.bf16.msra.mxu0 %v552
  %570 = vmatprep.subr.bf16.mxu0 0
  %571 = vmatpush1.bf16.msra.mxu0 %v553
  %572 = vmatprep.subr.bf16.mxu0 0
  %573 = vmatpush1.bf16.msra.mxu0 %v554
  %574 = vmatprep.subr.bf16.mxu0 0
  %575 = vmatpush1.bf16.msra.mxu0 %v555
  %576 = vmatprep.subr.bf16.mxu0 0
  %577 = vmatpush1.bf16.msra.mxu0 %v556
  %578 = vmatprep.subr.bf16.mxu0 0
  %579 = vmatpush1.bf16.msra.mxu0 %v557
  %580 = vmatprep.subr.bf16.mxu0 0
  %581 = vmatpush1.bf16.msra.mxu0 %v558
  %582 = vmatprep.subr.bf16.mxu0 0
  %583 = vmatpush1.bf16.msra.mxu0 %v559
  %584 = vmatprep.subr.bf16.mxu0 0
  %585 = vmatpush1.bf16.msra.mxu0 0
  %586 = vmatprep.subr.bf16.mxu0 0
  %587 = vmatpush1.bf16.msra.mxu0 0
  %588 = vmatprep.subr.bf16.mxu0 0
  %589 = vmatpush1.bf16.msra.mxu0 0
  %590 = vmatprep.subr.bf16.mxu0 0
  %591 = vmatpush1.bf16.msra.mxu0 0
  %592 = vmatprep.subr.bf16.mxu0 0
  %593 = vmatpush1.bf16.msra.mxu0 0
  %594 = vmatprep.subr.bf16.mxu0 0
  %595 = vmatpush1.bf16.msra.mxu0 0
  %596 = vmatprep.subr.bf16.mxu0 0
  %597 = vmatpush1.bf16.msra.mxu0 0
  %598 = vmatprep.subr.bf16.mxu0 0
  %599 = vmatpush1.bf16.msra.mxu0 0
  %600 = vmatprep.mubr.bf16.mxu0 0
  %601 = vmatmul.mubr.bf16.gmra.mrb[0].mxu0 %v488
  %v602 = vpop.f32.mrb[0].mxu0
  %v603 = vadd.f32 0.0, %v602
  %v604 = vpop.f32.mrb[0].mxu0
  %v605 = vpop.f32.mrb[0].mxu0
  %v606 = vadd.f32 0.0, %v605
  %v607 = vpop.f32.mrb[0].mxu0
  %608 = vmatprep.mubr.bf16.mxu0 0
  %609 = vmatmul.mubr.bf16.gmra.mrb[0].mxu0 %v489
  %v610 = vpop.f32.mrb[0].mxu0
  %v611 = vadd.f32 0.0, %v610
  %v612 = vpop.f32.mrb[0].mxu0
  %v613 = vpop.f32.mrb[0].mxu0
  %v614 = vadd.f32 0.0, %v613
  %v615 = vpop.f32.mrb[0].mxu0
  %616 = vmatprep.mubr.bf16.mxu0 0
  %617 = vmatmul.mubr.bf16.gmra.mrb[0].mxu0 %v490
  %v618 = vpop.f32.mrb[0].mxu0
  %v619 = vadd.f32 0.0, %v618
  %v620 = vpop.f32.mrb[0].mxu0
  %v621 = vpop.f32.mrb[0].mxu0
  %v622 = vadd.f32 0.0, %v621
  %v623 = vpop.f32.mrb[0].mxu0
  %624 = vmatprep.mubr.bf16.mxu0 0
  %625 = vmatmul.mubr.bf16.gmra.mrb[0].mxu0 %v491
  %v626 = vpop.f32.mrb[0].mxu0
  %v627 = vadd.f32 0.0, %v626
  %v628 = vpop.f32.mrb[0].mxu0
  %v629 = vpop.f32.mrb[0].mxu0
  %v630 = vadd.f32 0.0, %v629
  %v631 = vpop.f32.mrb[0].mxu0
  %632 = vmatprep.mubr.bf16.mxu0 0
  %633 = vmatmul.mubr.bf16.gmra.mrb[0].mxu0 %v492
  %v634 = vpop.f32.mrb[0].mxu0
  %v635 = vadd.f32 0.0, %v634
  %v636 = vpop.f32.mrb[0].mxu0
  %v637 = vpop.f32.mrb[0].mxu0
  %v638 = vadd.f32 0.0, %v637
  %v639 = vpop.f32.mrb[0].mxu0
  %640 = vmatprep.mubr.bf16.mxu0 0
  %641 = vmatmul.mubr.bf16.gmra.mrb[0].mxu0 %v493
  %v642 = vpop.f32.mrb[0].mxu0
  %v643 = vadd.f32 0.0, %v642
  %v644 = vpop.f32.mrb[0].mxu0
  %v645 = vpop.f32.mrb[0].mxu0
  %v646 = vadd.f32 0.0, %v645
  %v647 = vpop.f32.mrb[0].mxu0
  %648 = vmatprep.mubr.bf16.mxu0 0
  %649 = vmatmul.mubr.bf16.gmra.mrb[0].mxu0 %v494
  %v650 = vpop.f32.mrb[0].mxu0
  %v651 = vadd.f32 0.0, %v650
  %v652 = vpop.f32.mrb[0].mxu0
  %v653 = vpop.f32.mrb[0].mxu0
  %v654 = vadd.f32 0.0, %v653
  %v655 = vpop.f32.mrb[0].mxu0
  %656 = vmatprep.mubr.bf16.mxu0 0
  %657 = vmatmul.mubr.bf16.gmra.mrb[0].mxu0 %v495
  %v658 = vpop.f32.mrb[0].mxu0
  %v659 = vadd.f32 0.0, %v658
  %v660 = vpop.f32.mrb[0].mxu0
  %v661 = vpop.f32.mrb[0].mxu0
  %v662 = vadd.f32 0.0, %v661
  %v663 = vpop.f32.mrb[0].mxu0
  %664 = vmatprep.mubr.bf16.mxu0 0
  %665 = vmatmul.mubr.bf16.gmra.mrb[0].mxu0 %v496
  %v666 = vpop.f32.mrb[0].mxu0
  %v667 = vadd.f32 0.0, %v666
  %v668 = vpop.f32.mrb[0].mxu0
  %v669 = vpop.f32.mrb[0].mxu0
  %v670 = vadd.f32 0.0, %v669
  %v671 = vpop.f32.mrb[0].mxu0
  %672 = vmatprep.mubr.bf16.mxu0 0
  %673 = vmatmul.mubr.bf16.gmra.mrb[0].mxu0 %v497
  %v674 = vpop.f32.mrb[0].mxu0
  %v675 = vadd.f32 0.0, %v674
  %v676 = vpop.f32.mrb[0].mxu0
  %v677 = vpop.f32.mrb[0].mxu0
  %v678 = vadd.f32 0.0, %v677
  %v679 = vpop.f32.mrb[0].mxu0
  %680 = vmatprep.mubr.bf16.mxu0 0
  %681 = vmatmul.mubr.bf16.gmra.mrb[0].mxu0 %v498
  %v682 = vpop.f32.mrb[0].mxu0
  %v683 = vadd.f32 0.0, %v682
  %v684 = vpop.f32.mrb[0].mxu0
  %v685 = vpop.f32.mrb[0].mxu0
  %v686 = vadd.f32 0.0, %v685
  %v687 = vpop.f32.mrb[0].mxu0
  %688 = vmatprep.mubr.bf16.mxu0 0
  %689 = vmatmul.mubr.bf16.gmra.mrb[0].mxu0 %v499
  %v690 = vpop.f32.mrb[0].mxu0
  %v691 = vadd.f32 0.0, %v690
  %v692 = vpop.f32.mrb[0].mxu0
  %v693 = vpop.f32.mrb[0].mxu0
  %v694 = vadd.f32 0.0, %v693
  %v695 = vpop.f32.mrb[0].mxu0
  %696 = vmatprep.mubr.bf16.mxu0 0
  %697 = vmatmul.mubr.bf16.gmra.mrb[0].mxu0 %v500
  %v698 = vpop.f32.mrb[0].mxu0
  %v699 = vadd.f32 0.0, %v698
  %v700 = vpop.f32.mrb[0].mxu0
  %v701 = vpop.f32.mrb[0].mxu0
  %v702 = vadd.f32 0.0, %v701
  %v703 = vpop.f32.mrb[0].mxu0
  %704 = vmatprep.mubr.bf16.mxu0 0
  %705 = vmatmul.mubr.bf16.gmra.mrb[0].mxu0 %v501
  %v706 = vpop.f32.mrb[0].mxu0
  %v707 = vadd.f32 0.0, %v706
  %v708 = vpop.f32.mrb[0].mxu0
  %v709 = vpop.f32.mrb[0].mxu0
  %v710 = vadd.f32 0.0, %v709
  %v711 = vpop.f32.mrb[0].mxu0
  %712 = vmatprep.mubr.bf16.mxu0 0
  %713 = vmatmul.mubr.bf16.gmra.mrb[0].mxu0 %v502
  %v714 = vpop.f32.mrb[0].mxu0
  %v715 = vadd.f32 0.0, %v714
  %v716 = vpop.f32.mrb[0].mxu0
  %v717 = vpop.f32.mrb[0].mxu0
  %v718 = vadd.f32 0.0, %v717
  %v719 = vpop.f32.mrb[0].mxu0
  %720 = vmatprep.mubr.bf16.mxu0 0
  %721 = vmatmul.mubr.bf16.gmra.mrb[0].mxu0 %v503
  %v722 = vpop.f32.mrb[0].mxu0
  %v723 = vadd.f32 0.0, %v722
  %v724 = vpop.f32.mrb[0].mxu0
  %v725 = vpop.f32.mrb[0].mxu0
  %v726 = vadd.f32 0.0, %v725
  %v727 = vpop.f32.mrb[0].mxu0
  %728 = vdwg.mxu0
  %v729 = vadd.f32 %v456, %v603
  %v730 = vadd.f32 %v457, %v606
  %v731 = vadd.f32 %v458, %v611
  %v732 = vadd.f32 %v459, %v614
  %v733 = vadd.f32 %v460, %v619
  %v734 = vadd.f32 %v461, %v622
  %v735 = vadd.f32 %v462, %v627
  %v736 = vadd.f32 %v463, %v630
  %v737 = vadd.f32 %v464, %v635
  %v738 = vadd.f32 %v465, %v638
  %v739 = vadd.f32 %v466, %v643
  %v740 = vadd.f32 %v467, %v646
  %v741 = vadd.f32 %v468, %v651
  %v742 = vadd.f32 %v469, %v654
  %v743 = vadd.f32 %v470, %v659
  %v744 = vadd.f32 %v471, %v662
  %v745 = vadd.f32 %v472, %v667
  %v746 = vadd.f32 %v473, %v670
  %v747 = vadd.f32 %v474, %v675
  %v748 = vadd.f32 %v475, %v678
  %v749 = vadd.f32 %v476, %v683
  %v750 = vadd.f32 %v477, %v686
  %v751 = vadd.f32 %v478, %v691
  %v752 = vadd.f32 %v479, %v694
  %v753 = vadd.f32 %v480, %v699
  %v754 = vadd.f32 %v481, %v702
  %v755 = vadd.f32 %v482, %v707
  %v756 = vadd.f32 %v483, %v710
  %v757 = vadd.f32 %v484, %v715
  %v758 = vadd.f32 %v485, %v718
  %v759 = vadd.f32 %v486, %v723
  %v760 = vadd.f32 %v487, %v726
  %761 = vst [vmem:[#allocation2] sm:$0xff] %v729
  %762 = vst [vmem:[#allocation2 + $0x8] sm:$0xff] %v730
  %763 = vst [vmem:[#allocation2 + $0x10] sm:$0xff] %v731
  %764 = vst [vmem:[#allocation2 + $0x18] sm:$0xff] %v732
  %765 = vst [vmem:[#allocation2 + $0x20] sm:$0xff] %v733
  %766 = vst [vmem:[#allocation2 + $0x28] sm:$0xff] %v734
  %767 = vst [vmem:[#allocation2 + $0x30] sm:$0xff] %v735
  %768 = vst [vmem:[#allocation2 + $0x38] sm:$0xff] %v736
  %769 = vst [vmem:[#allocation2 + $0x40] sm:$0xff] %v737
  %770 = vst [vmem:[#allocation2 + $0x48] sm:$0xff] %v738
  %771 = vst [vmem:[#allocation2 + $0x50] sm:$0xff] %v739
  %772 = vst [vmem:[#allocation2 + $0x58] sm:$0xff] %v740
  %773 = vst [vmem:[#allocation2 + $0x60] sm:$0xff] %v741
  %774 = vst [vmem:[#allocation2 + $0x68] sm:$0xff] %v742
  %775 = vst [vmem:[#allocation2 + $0x70] sm:$0xff] %v743
  %776 = vst [vmem:[#allocation2 + $0x78] sm:$0xff] %v744
  %777 = vst [vmem:[#allocation2 + $0x80] sm:$0xff] %v745
  %778 = vst [vmem:[#allocation2 + $0x88] sm:$0xff] %v746
  %779 = vst [vmem:[#allocation2 + $0x90] sm:$0xff] %v747
  %780 = vst [vmem:[#allocation2 + $0x98] sm:$0xff] %v748
  %781 = vst [vmem:[#allocation2 + $0xa0] sm:$0xff] %v749
  %782 = vst [vmem:[#allocation2 + $0xa8] sm:$0xff] %v750
  %783 = vst [vmem:[#allocation2 + $0xb0] sm:$0xff] %v751
  %784 = vst [vmem:[#allocation2 + $0xb8] sm:$0xff] %v752
  %785 = vst [vmem:[#allocation2 + $0xc0] sm:$0xff] %v753
  %786 = vst [vmem:[#allocation2 + $0xc8] sm:$0xff] %v754
  %787 = vst [vmem:[#allocation2 + $0xd0] sm:$0xff] %v755
  %788 = vst [vmem:[#allocation2 + $0xd8] sm:$0xff] %v756
  %789 = vst [vmem:[#allocation2 + $0xe0] sm:$0xff] %v757
  %790 = vst [vmem:[#allocation2 + $0xe8] sm:$0xff] %v758
  %791 = vst [vmem:[#allocation2 + $0xf0] sm:$0xff] %v759
  %792 = vst [vmem:[#allocation2 + $0xf8] sm:$0xff] %v760
  // Predicated region
  $region26: #{position_wise_ffn.1} parent=0 // pred_check
    %p793 = pneg %p21
  $region27: #{position_wise_ffn.1} parent=0 // pred_check_branch
    %795 = sbr.rel (%p793) target = $region29
  $region28: #{position_wise_ffn.1} parent=0 // pred_region
    %v796 = vld [vmem:[#allocation2] sm:$0xff]
    %v797 = vld [vmem:[#allocation2 + $0x8] sm:$0xff]
    %v798 = vld [vmem:[#allocation2 + $0x10] sm:$0xff]
    %v799 = vld [vmem:[#allocation2 + $0x18] sm:$0xff]
    %v800 = vld [vmem:[#allocation2 + $0x20] sm:$0xff]
    %v801 = vld [vmem:[#allocation2 + $0x28] sm:$0xff]
    %v802 = vld [vmem:[#allocation2 + $0x30] sm:$0xff]
    %v803 = vld [vmem:[#allocation2 + $0x38] sm:$0xff]
    %v804 = vld [vmem:[#allocation2 + $0x40] sm:$0xff]
    %v805 = vld [vmem:[#allocation2 + $0x48] sm:$0xff]
    %v806 = vld [vmem:[#allocation2 + $0x50] sm:$0xff]
    %v807 = vld [vmem:[#allocation2 + $0x58] sm:$0xff]
    %v808 = vld [vmem:[#allocation2 + $0x60] sm:$0xff]
    %v809 = vld [vmem:[#allocation2 + $0x68] sm:$0xff]
    %v810 = vld [vmem:[#allocation2 + $0x70] sm:$0xff]
    %v811 = vld [vmem:[#allocation2 + $0x78] sm:$0xff]
    %v812 = vld [vmem:[#allocation2 + $0x80] sm:$0xff]
    %v813 = vld [vmem:[#allocation2 + $0x88] sm:$0xff]
    %v814 = vld [vmem:[#allocation2 + $0x90] sm:$0xff]
    %v815 = vld [vmem:[#allocation2 + $0x98] sm:$0xff]
    %v816 = vld [vmem:[#allocation2 + $0xa0] sm:$0xff]
    %v817 = vld [vmem:[#allocation2 + $0xa8] sm:$0xff]
    %v818 = vld [vmem:[#allocation2 + $0xb0] sm:$0xff]
    %v819 = vld [vmem:[#allocation2 + $0xb8] sm:$0xff]
    %v820 = vld [vmem:[#allocation2 + $0xc0] sm:$0xff]
    %v821 = vld [vmem:[#allocation2 + $0xc8] sm:$0xff]
    %v822 = vld [vmem:[#allocation2 + $0xd0] sm:$0xff]
    %v823 = vld [vmem:[#allocation2 + $0xd8] sm:$0xff]
    %v824 = vld [vmem:[#allocation2 + $0xe0] sm:$0xff]
    %v825 = vld [vmem:[#allocation2 + $0xe8] sm:$0xff]
    %v826 = vld [vmem:[#allocation2 + $0xf0] sm:$0xff]
    %v827 = vld [vmem:[#allocation2 + $0xf8] sm:$0xff]
    %828 = vst [vmem:[%s5] sm:$0xff] %v796
    %829 = vst [vmem:[%s5 + $0x8] sm:$0xff] %v797
    %830 = vst [vmem:[%s5 + $0x10] sm:$0xff] %v798
    %831 = vst [vmem:[%s5 + $0x18] sm:$0xff] %v799
    %832 = vst [vmem:[%s5 + $0x20] sm:$0xff] %v800
    %833 = vst [vmem:[%s5 + $0x28] sm:$0xff] %v801
    %834 = vst [vmem:[%s5 + $0x30] sm:$0xff] %v802
    %835 = vst [vmem:[%s5 + $0x38] sm:$0xff] %v803
    %836 = vst [vmem:[%s5 + $0x40] sm:$0xff] %v804
    %837 = vst [vmem:[%s5 + $0x48] sm:$0xff] %v805
    %838 = vst [vmem:[%s5 + $0x50] sm:$0xff] %v806
    %839 = vst [vmem:[%s5 + $0x58] sm:$0xff] %v807
    %840 = vst [vmem:[%s5 + $0x60] sm:$0xff] %v808
    %841 = vst [vmem:[%s5 + $0x68] sm:$0xff] %v809
    %842 = vst [vmem:[%s5 + $0x70] sm:$0xff] %v810
    %843 = vst [vmem:[%s5 + $0x78] sm:$0xff] %v811
    %844 = vst [vmem:[%s5 + $0x80] sm:$0xff] %v812
    %845 = vst [vmem:[%s5 + $0x88] sm:$0xff] %v813
    %846 = vst [vmem:[%s5 + $0x90] sm:$0xff] %v814
    %847 = vst [vmem:[%s5 + $0x98] sm:$0xff] %v815
    %848 = vst [vmem:[%s5 + $0xa0] sm:$0xff] %v816
    %849 = vst [vmem:[%s5 + $0xa8] sm:$0xff] %v817
    %850 = vst [vmem:[%s5 + $0xb0] sm:$0xff] %v818
    %851 = vst [vmem:[%s5 + $0xb8] sm:$0xff] %v819
    %852 = vst [vmem:[%s5 + $0xc0] sm:$0xff] %v820
    %853 = vst [vmem:[%s5 + $0xc8] sm:$0xff] %v821
    %854 = vst [vmem:[%s5 + $0xd0] sm:$0xff] %v822
    %855 = vst [vmem:[%s5 + $0xd8] sm:$0xff] %v823
    %856 = vst [vmem:[%s5 + $0xe0] sm:$0xff] %v824
    %857 = vst [vmem:[%s5 + $0xe8] sm:$0xff] %v825
    %858 = vst [vmem:[%s5 + $0xf0] sm:$0xff] %v826
    %859 = vst [vmem:[%s5 + $0xf8] sm:$0xff] %v827
  $region29: #{position_wise_ffn.1} parent=0 // pred_fallthru
    _
  // Predicated region
  $region30: #{position_wise_ffn.1} parent=0 // pred_check
    _
  $region31: #{position_wise_ffn.1} parent=0 // pred_check_branch
    %861 = sbr.rel (0) target = $region33
  $region32: #{position_wise_ffn.1} parent=0 // pred_region
    _
  $region33: #{position_wise_ffn.1} parent=0 // pred_fallthru
    _
  // Predicated region
  $region34: #{position_wise_ffn.1} parent=0 // pred_check
    _
  $region35: #{position_wise_ffn.1} parent=0 // pred_check_branch
    %863 = sbr.rel (0) target = $region37
  $region36: #{position_wise_ffn.1} parent=0 // pred_region
    _
  $region37: #{position_wise_ffn.1} parent=0 // pred_fallthru
    _

</llo_original>
